<compile_context>
chip_gen: v7x
topology: tpu7x:2x2x1
jax: 0.10.0
libtpu: 0.0.40
codegen_flags: <defaults>
</compile_context>

<pallas_src>
import functools
import math

import jax
import jax.numpy as jnp
import numpy as np
from jax import lax
from jax.experimental import pallas as pl
from jax.experimental.pallas import tpu as pltpu

BN_EPS = 1e-5


# ------------------------------ Pallas kernel -------------------------------

def _resblock_kernel(xs_ref, w1_ref, b1_ref, w2_ref, bo_ref, o_ref, hscr_ref,
                     *, n_imgs, ho):
    """Fully fused ResBlock forward on VMEM-resident data.

    xs_ref  : (M, 3*K)        conv1 row-tap slab, M = N*Ho, K = W*Ci.
                              Lane block t of row (n, r) = H-zero-padded x row
                              (2r + t), all W columns / Ci channels.
    w1_ref  : (3*K, C1 + Cf)  conv1 selection weights (BN folded) with the
                              id-path (avgpool+1x1conv+BN) selection weights
                              appended as extra output columns.
    b1_ref  : (1, C1)         conv1 folded-BN bias (tiled over Wo).
    w2_ref  : (3*C1, Cf)      conv2 row-tap selection weights (BN folded).
    bo_ref  : (1, Cf)         merged conv2-BN + id-path-BN bias.
    o_ref   : (M, Cf)         output; row (n, r) = NHWC row r of image n.
    hscr_ref: (M, 3*C1)       f32 scratch: conv2 K-concatenated tap slab.
    """
    f32 = jnp.float32
    c1 = b1_ref.shape[1]

    # conv1 + id path + all images in a single MXU matmul (f32 accumulate).
    z = jnp.dot(xs_ref[...], w1_ref[...], preferred_element_type=f32)
    h = jnp.maximum(z[:, :c1] + b1_ref[...], 0.0)       # Conv3x3(s2)+BN+ReLU
    idp = z[:, c1:]                                      # AvgPool+Conv1x1+BN

    # Build conv2's K-concatenated tap slab in a zeroed VMEM scratch: lane
    # block t of row (n, r) holds h[n, r - 1 + t] (zero outside the image).
    hscr_ref[...] = jnp.zeros_like(hscr_ref)
    hscr_ref[:, c1:2 * c1] = h                           # tap kh=1
    for n in range(n_imgs):                              # static, tiny
        lo = n * ho
        hscr_ref[lo + 1:lo + ho, 0:c1] = h[lo:lo + ho - 1]          # kh=0
        hscr_ref[lo:lo + ho - 1, 2 * c1:3 * c1] = h[lo + 1:lo + ho]  # kh=2

    # conv2 (3x3, stride 1) + folded BN: one MXU matmul over the tap slab.
    # Only the MXU operand is cast to the compute dtype (v5e-safe).
    y = jnp.dot(hscr_ref[...].astype(w2_ref.dtype), w2_ref[...],
                preferred_element_type=f32)

    # residual add + final ReLU, f32 epilogue, single contiguous store.
    o_ref[...] = jnp.maximum(y + idp + bo_ref[...], 0.0).astype(o_ref.dtype)


# ---------------------- one-off weight preparation ---------------------------

def _conv_row_tap_weights(w_hwio, scale, w_in, w_out, stride):
    """Fold kw taps, W-direction zero padding ((ks-1)//2) and the BN scale of a
    ks x ks conv into per-kh block-sparse matrices.

    sel[kh, w*Cin + c, wo*Cout + f] = scale[f] * w[kh, w - stride*wo + pad, c, f]
    when that kw tap is in range, else 0, so that (rows_for_kh @ sel[kh]) summed
    over kh is the conv output laid out as [row, wo*Cout + f]."""
    ks, _, cin, cout = w_hwio.shape
    pad = (ks - 1) // 2
    kw = jnp.arange(w_in)[:, None] - stride * jnp.arange(w_out)[None, :] + pad
    valid = (kw >= 0) & (kw < ks)                               # (w_in, w_out)
    sel = w_hwio[:, jnp.clip(kw, 0, ks - 1), :, :]              # (ks, w_in, w_out, cin, cout)
    sel = jnp.where(valid[None, :, :, None, None], sel, 0.0)
    sel = sel * scale[None, None, None, None, :]
    sel = jnp.transpose(sel, (0, 1, 3, 2, 4))                   # (ks, w_in, cin, w_out, cout)
    return sel.reshape(ks, w_in * cin, w_out * cout)


def _idpath_weights(wid_hwio, scale, w_in, w_out):
    """AvgPool2d(2,2) + Conv1x1 + BN folded into one (w_in*Cin, w_out*Cout)
    block-sparse matrix; the H-direction half of the pooling average happens by
    summing the two H taps (hence the 1/4 here)."""
    cin, cout = wid_hwio.shape[2], wid_hwio.shape[3]
    wmat = wid_hwio.reshape(cin, cout) * scale[None, :] * 0.25
    dw = jnp.arange(w_in)[:, None] - 2 * jnp.arange(w_out)[None, :]
    valid = (dw == 0) | (dw == 1)                               # (w_in, w_out)
    sel = jnp.where(valid[:, None, :, None], wmat[None, :, None, :], 0.0)
    return sel.reshape(w_in * cin, w_out * cout)


def prepare_resblock(params, width, stride=2, compute_dtype=jnp.float32):
    """One-off (per parameter set) construction of the fused selection weights.
    Call once and reuse the result across forward calls."""
    ks, _, ci, nh2 = params["w1"].shape
    assert ks == 3 and stride == 2
    nf = params["w2"].shape[-1]
    wo = width // stride
    k = width * ci

    w1sel = _conv_row_tap_weights(params["w1"], params["s1"][0], width, wo, stride)
    w2sel = _conv_row_tap_weights(params["w2"], params["s2"][0], wo, wo, 1)
    idsel = _idpath_weights(params["wid"], params["sid"][0], width, wo)

    # conv1 taps stacked along K; id-path weights appended as extra output
    # columns (id path uses tap blocks 1 and 2 only).
    w1cat = w1sel.reshape(3 * k, wo * nh2)
    idext = jnp.concatenate(
        [jnp.zeros((k, wo * nf), idsel.dtype), idsel, idsel], axis=0)
    w1fused = jnp.concatenate([w1cat, idext], axis=1)           # (3K, C1+Cf)
    w2cat = w2sel.reshape(3 * wo * nh2, wo * nf)                # (3C1, Cf)

    b1row = jnp.tile(params["b1"][0], wo)[None, :]                      # (1, C1)
    borow = jnp.tile(params["b2"][0] + params["bid"][0], wo)[None, :]   # (1, Cf)

    return dict(w1=w1fused.astype(compute_dtype),
                b1=b1row.astype(jnp.float32),
                w2=w2cat.astype(compute_dtype),
                bo=borow.astype(jnp.float32))


# ------------------------------- forward pass --------------------------------

def resblock_forward(x_nchw, prep, stride=2, out_format="nchw"):
    """relu(conv_path(x) + id_path(x)) as a single fused Pallas kernel call.
    `prep` comes from prepare_resblock (weights are NOT rebuilt per call)."""
    assert stride == 2, "this fused kernel implements the stride=2 config"
    N, Ci, H, W = x_nchw.shape
    assert H % 2 == 0 and W % 2 == 0
    Ho, Wo = H // stride, W // stride
    cdt = prep["w1"].dtype
    c1 = prep["b1"].shape[1]          # Wo * nh2
    cf = prep["bo"].shape[1]          # Wo * nf
    nf = cf // Wo
    K = W * Ci
    assert prep["w1"].shape == (3 * K, c1 + cf)
    assert prep["w2"].shape == (3 * c1, cf)

    # Single fused input pass: NCHW->NHWC transpose + cast + H zero-pad +
    # row-tap stacking -> (N*Ho, 3*W*Ci) conv1 slab (id path reuses taps 1&2).
    x = jnp.transpose(x_nchw, (0, 2, 3, 1)).astype(cdt)
    xp = jnp.pad(x, ((0, 0), (1, 1), (0, 0), (0, 0))).reshape(N, H + 2, K)
    slab = jnp.concatenate(
        [xp[:, 0:H:2], xp[:, 1:H + 1:2], xp[:, 2:H + 2:2]], axis=-1)
    slab = slab.reshape(N * Ho, 3 * K)

    vmem = pl.BlockSpec(memory_space=pltpu.MemorySpace.VMEM)
    out2d = pl.pallas_call(
        functools.partial(_resblock_kernel, n_imgs=N, ho=Ho),
        out_shape=jax.ShapeDtypeStruct((N * Ho, cf), jnp.float32),
        in_specs=[vmem] * 5,
        out_specs=vmem,
        scratch_shapes=[pltpu.VMEM((N * Ho, 3 * c1), jnp.float32)],
    )(slab, prep["w1"], prep["b1"], prep["w2"], prep["bo"])

    out = out2d.reshape(N, Ho, Wo, nf)            # NHWC, kernel-native layout
    if out_format == "nhwc":
        return out                                # no extra transpose
    return jnp.transpose(out, (0, 3, 1, 2))       # NCHW (PyTorch semantics)


# --------------------------- reference (pure JAX) ----------------------------

def _avg_pool2(x_nhwc, stride):
    N, H, W, C = x_nhwc.shape
    return x_nhwc.reshape(N, H // stride, stride, W // stride, stride, C).mean(axis=(2, 4))


def resblock_reference(x_nchw, params, stride):
    x = jnp.transpose(x_nchw, (0, 2, 3, 1))

    def conv(z, w, s, pad):
        return lax.conv_general_dilated(
            z, w, (s, s), [(pad, pad), (pad, pad)],
            dimension_numbers=("NHWC", "HWIO", "NHWC"))

    h = conv(x, params["w1"], stride, 1) * params["s1"][0] + params["b1"][0]
    h = jnp.maximum(h, 0.0)
    h = conv(h, params["w2"], 1, 1) * params["s2"][0] + params["b2"][0]
    xid = _avg_pool2(x, stride) if stride != 1 else x
    idp = conv(xid, params["wid"], 1, 0) * params["sid"][0] + params["bid"][0]
    out = jnp.maximum(h + idp, 0.0)
    return jnp.transpose(out, (0, 3, 1, 2))


# ------------------------------- parameters ----------------------------------

def make_params(key, ni, nh2, nf, ks=3):
    kw1, kw2, kwid, kbn1, kbn2, kbnid = jax.random.split(key, 6)

    def kaiming(k, shape):  # HWIO
        fan_in = shape[0] * shape[1] * shape[2]
        return jax.random.normal(k, shape, jnp.float32) * math.sqrt(2.0 / fan_in)

    def folded_bn(k, c):
        k1, k2, k3, k4 = jax.random.split(k, 4)
        gamma = 1.0 + 0.1 * jax.random.normal(k1, (c,), jnp.float32)
        beta = 0.1 * jax.random.normal(k2, (c,), jnp.float32)
        mean = 0.1 * jax.random.normal(k3, (c,), jnp.float32)
        var = 0.5 + jnp.abs(jax.random.normal(k4, (c,), jnp.float32))
        scale = gamma / jnp.sqrt(var + BN_EPS)
        bias = beta - mean * scale
        return scale[None, :], bias[None, :]

    s1, b1 = folded_bn(kbn1, nh2)
    s2, b2 = folded_bn(kbn2, nf)
    sid, bid = folded_bn(kbnid, nf)
    return dict(
        w1=kaiming(kw1, (ks, ks, ni, nh2)),
        w2=kaiming(kw2, (ks, ks, nh2, nf)),
        wid=kaiming(kwid, (1, 1, ni, nf)),
        s1=s1, b1=b1, s2=s2, b2=b2, sid=sid, bid=bid,
    )


# ---------------------------------- main --------------------------------------

if __name__ == "__main__":
    expansion, ni_base, nf_base, stride = 1, 4, 8, 2
    ni, nf = ni_base * expansion, nf_base * expansion
    nh2 = nf_base  # nh2 defaults to nf (pre-expansion) in ResBlock.__init__

    key = jax.random.PRNGKey(0)
    kx, kp = jax.random.split(key)
    x = jax.random.normal(kx, (2, ni, 16, 16), jnp.float32)   # NCHW, like PyTorch
    params = make_params(kp, ni, nh2, nf)
    W = x.shape[-1]

    y_ref = resblock_reference(x, params, stride)

    # f32 path: one-off weight prep + strict correctness check (NCHW output).
    prep_f32 = prepare_resblock(params, W, stride)
    fwd = jax.jit(functools.partial(resblock_forward, stride=stride,
                                    out_format="nchw"))
    y = jax.block_until_ready(fwd(x, prep_f32))
    np.testing.assert_allclose(np.asarray(y), np.asarray(y_ref),
                               rtol=2e-3, atol=2e-3)
    assert y.shape == (2, nf, 8, 8)

    # bf16-operand path (v6e/v7x MXU friendly), NHWC output (skips the final
    # transpose); accumulation + epilogue stay f32.
    prep_bf16 = prepare_resblock(params, W, stride, compute_dtype=jnp.bfloat16)
    fwd_bf16 = jax.jit(functools.partial(resblock_forward, stride=stride,
                                         out_format="nhwc"))
    y_bf16 = jax.block_until_ready(fwd_bf16(x, prep_bf16))
    np.testing.assert_allclose(np.asarray(y_bf16),
                               np.asarray(jnp.transpose(y_ref, (0, 2, 3, 1))),
                               rtol=1e-1, atol=1e-1)

    print("KERNEL_OK")
</pallas_src>

<mosaic_0001>
module attributes {stable_mosaic.version = 11 : i64} {
  func.func @_resblock_kernel(%arg0: memref<16x192xf32, #tpu.memory_space<vmem>>, %arg1: memref<192x128xf32, #tpu.memory_space<vmem>>, %arg2: memref<1x64xf32, #tpu.memory_space<vmem>>, %arg3: memref<192x64xf32, #tpu.memory_space<vmem>>, %arg4: memref<1x64xf32, #tpu.memory_space<vmem>>, %arg5: memref<16x64xf32, #tpu.memory_space<vmem>>, %arg6: memref<16x192xf32, #tpu.memory_space<vmem>>) attributes {dimension_semantics = [], scalar_prefetch = 0 : i64, scratch_operands = 1 : i64, tpu.core_type = #tpu.core_type<tc>} {
    %c0 = arith.constant 0 : index
    %c0_0 = arith.constant 0 : index
    %0 = vector.load %arg0[%c0, %c0_0] : memref<16x192xf32, #tpu.memory_space<vmem>>, vector<16x192xf32>
    %c0_1 = arith.constant 0 : index
    %c0_2 = arith.constant 0 : index
    %1 = vector.load %arg1[%c0_1, %c0_2] : memref<192x128xf32, #tpu.memory_space<vmem>>, vector<192x128xf32>
    %cst = arith.constant dense<0.000000e+00> : vector<16x128xf32>
    %2 = tpu.matmul %0, %1, %cst {dimension_numbers = #tpu.dot_dimension_numbers<[1], [0], [0], [1], [0, 0, 1, 1], [], []>} : vector<16x192xf32>, vector<192x128xf32>, vector<16x128xf32> -> vector<16x128xf32>
    %3 = vector.extract_strided_slice %2 {offsets = [0, 0], sizes = [16, 64], strides = [1, 1]} : vector<16x128xf32> to vector<16x64xf32>
    %c0_3 = arith.constant 0 : index
    %c0_4 = arith.constant 0 : index
    %4 = vector.load %arg2[%c0_3, %c0_4] : memref<1x64xf32, #tpu.memory_space<vmem>>, vector<1x64xf32>
    %5 = vector.broadcast %4 : vector<1x64xf32> to vector<16x64xf32>
    %6 = arith.addf %3, %5 : vector<16x64xf32>
    %cst_5 = arith.constant 0.000000e+00 : f32
    %7 = vector.broadcast %cst_5 : f32 to vector<16x64xf32>
    %8 = arith.maximumf %6, %7 : vector<16x64xf32>
    %9 = vector.extract_strided_slice %2 {offsets = [0, 64], sizes = [16, 64], strides = [1, 1]} : vector<16x128xf32> to vector<16x64xf32>
    %cst_6 = arith.constant 0.000000e+00 : f32
    %10 = vector.broadcast %cst_6 : f32 to vector<16x192xf32>
    %c0_7 = arith.constant 0 : index
    %c0_8 = arith.constant 0 : index
    %11 = vector.load %arg6[%c0_7, %c0_8] : memref<16x192xf32, #tpu.memory_space<vmem>>, vector<16x192xf32>
    tpu.vector_store %arg6[%c0_7, %c0_8], %10 {strides = array<i32>} : memref<16x192xf32, #tpu.memory_space<vmem>>, vector<16x192xf32>,
    %c0_9 = arith.constant 0 : index
    %c64 = arith.constant 64 : index
    %12 = vector.load %arg6[%c0_9, %c64] : memref<16x192xf32, #tpu.memory_space<vmem>>, vector<16x64xf32>
    tpu.vector_store %arg6[%c0_9, %c64], %8 {strides = array<i32>} : memref<16x192xf32, #tpu.memory_space<vmem>>, vector<16x64xf32>,
    %13 = vector.extract_strided_slice %8 {offsets = [0, 0], sizes = [7, 64], strides = [1, 1]} : vector<16x64xf32> to vector<7x64xf32>
    %c1 = arith.constant 1 : index
    %c0_10 = arith.constant 0 : index
    %14 = vector.load %arg6[%c1, %c0_10] : memref<16x192xf32, #tpu.memory_space<vmem>>, vector<7x64xf32>
    tpu.vector_store %arg6[%c1, %c0_10], %13 {strides = array<i32>} : memref<16x192xf32, #tpu.memory_space<vmem>>, vector<7x64xf32>,
    %15 = vector.extract_strided_slice %8 {offsets = [1, 0], sizes = [7, 64], strides = [1, 1]} : vector<16x64xf32> to vector<7x64xf32>
    %c0_11 = arith.constant 0 : index
    %c128 = arith.constant 128 : index
    %16 = vector.load %arg6[%c0_11, %c128] : memref<16x192xf32, #tpu.memory_space<vmem>>, vector<7x64xf32>
    tpu.vector_store %arg6[%c0_11, %c128], %15 {strides = array<i32>} : memref<16x192xf32, #tpu.memory_space<vmem>>, vector<7x64xf32>,
    %17 = vector.extract_strided_slice %8 {offsets = [8, 0], sizes = [7, 64], strides = [1, 1]} : vector<16x64xf32> to vector<7x64xf32>
    %c9 = arith.constant 9 : index
    %c0_12 = arith.constant 0 : index
    %18 = vector.load %arg6[%c9, %c0_12] : memref<16x192xf32, #tpu.memory_space<vmem>>, vector<7x64xf32>
    tpu.vector_store %arg6[%c9, %c0_12], %17 {strides = array<i32>} : memref<16x192xf32, #tpu.memory_space<vmem>>, vector<7x64xf32>,
    %19 = vector.extract_strided_slice %8 {offsets = [9, 0], sizes = [7, 64], strides = [1, 1]} : vector<16x64xf32> to vector<7x64xf32>
    %c8 = arith.constant 8 : index
    %c128_13 = arith.constant 128 : index
    %20 = vector.load %arg6[%c8, %c128_13] : memref<16x192xf32, #tpu.memory_space<vmem>>, vector<7x64xf32>
    tpu.vector_store %arg6[%c8, %c128_13], %19 {strides = array<i32>} : memref<16x192xf32, #tpu.memory_space<vmem>>, vector<7x64xf32>,
    %c0_14 = arith.constant 0 : index
    %c0_15 = arith.constant 0 : index
    %21 = vector.load %arg6[%c0_14, %c0_15] : memref<16x192xf32, #tpu.memory_space<vmem>>, vector<16x192xf32>
    %c0_16 = arith.constant 0 : index
    %c0_17 = arith.constant 0 : index
    %22 = vector.load %arg3[%c0_16, %c0_17] : memref<192x64xf32, #tpu.memory_space<vmem>>, vector<192x64xf32>
    %cst_18 = arith.constant dense<0.000000e+00> : vector<16x64xf32>
    %23 = tpu.matmul %21, %22, %cst_18 {dimension_numbers = #tpu.dot_dimension_numbers<[1], [0], [0], [1], [0, 0, 1, 1], [], []>} : vector<16x192xf32>, vector<192x64xf32>, vector<16x64xf32> -> vector<16x64xf32>
    %24 = arith.addf %23, %9 : vector<16x64xf32>
    %c0_19 = arith.constant 0 : index
    %c0_20 = arith.constant 0 : index
    %25 = vector.load %arg4[%c0_19, %c0_20] : memref<1x64xf32, #tpu.memory_space<vmem>>, vector<1x64xf32>
    %26 = vector.broadcast %25 : vector<1x64xf32> to vector<16x64xf32>
    %27 = arith.addf %24, %26 : vector<16x64xf32>
    %cst_21 = arith.constant 0.000000e+00 : f32
    %28 = vector.broadcast %cst_21 : f32 to vector<16x64xf32>
    %29 = arith.maximumf %27, %28 : vector<16x64xf32>
    %c0_22 = arith.constant 0 : index
    %c0_23 = arith.constant 0 : index
    %30 = vector.load %arg5[%c0_22, %c0_23] : memref<16x64xf32, #tpu.memory_space<vmem>>, vector<16x64xf32>
    tpu.vector_store %arg5[%c0_22, %c0_23], %29 {strides = array<i32>} : memref<16x64xf32, #tpu.memory_space<vmem>>, vector<16x64xf32>,
    return
  }
}

</mosaic_0001>

<llo_original>
// kernel: resblock_forward.1
$region0: #{resblock_forward.1}
  #allocation0 [shape = 'u32[]', space=smem, size = 0x4, offset = 0x4, fixed_abs, tag = 'smem constant byte address 0x4 - core index']
  #allocation1 [shape = 'u32[144,128]{1,0:T(1,128)}', space=vmem, size = 0x12000, scoped, tag = 'internal scratch']
  #allocation2 [shape = 'f32[16,192]{1,0:T(8,128)}', space=vmem, size = 0x4000, scoped, tag = 'scratch operand']
  %s0 = inlined_call_operand.vmem [shape: f32[16,192], index: 0, kind: input, shape index: {}]
  %s1 = inlined_call_operand.vmem [shape: f32[192,128], index: 1, kind: input, shape index: {}]
  %s2 = inlined_call_operand.vmem [shape: f32[1,64], index: 2, kind: input, shape index: {}]
  %s3 = inlined_call_operand.vmem [shape: f32[192,64], index: 3, kind: input, shape index: {}]
  %s4 = inlined_call_operand.vmem [shape: f32[1,64], index: 4, kind: input, shape index: {}]
  %s5 = inlined_call_operand.vmem [shape: f32[16,64], index: 5, kind: output, shape index: {}]
  %s6 = sld [smem:[#allocation0]]
  $region30: #{resblock_forward.1} parent=0
    _
  %s8 = ssub.s32 1, %s6
  %s9 = scalar_select 0, %s8, %s6
  // Predicated region
  $region2: #{resblock_forward.1} parent=0 // pred_check
    _
  $region3: #{resblock_forward.1} parent=0 // pred_check_branch
    %11 = sbr.rel (0) target = $region5
  $region4: #{resblock_forward.1} parent=0 // pred_region
    _
  $region5: #{resblock_forward.1} parent=0 // pred_fallthru
    _
  // Predicated region
  $region6: #{resblock_forward.1} parent=0 // pred_check
    _
  $region7: #{resblock_forward.1} parent=0 // pred_check_branch
    %13 = sbr.rel (0) target = $region9
  $region8: #{resblock_forward.1} parent=0 // pred_region
    _
  $region9: #{resblock_forward.1} parent=0 // pred_fallthru
    _
  // Predicated region
  $region10: #{resblock_forward.1} parent=0 // pred_check
    _
  $region11: #{resblock_forward.1} parent=0 // pred_check_branch
    %15 = sbr.rel (0) target = $region13
  $region12: #{resblock_forward.1} parent=0 // pred_region
    _
  $region13: #{resblock_forward.1} parent=0 // pred_fallthru
    _
  // Predicated region
  $region14: #{resblock_forward.1} parent=0 // pred_check
    _
  $region15: #{resblock_forward.1} parent=0 // pred_check_branch
    %17 = sbr.rel (0) target = $region17
  $region16: #{resblock_forward.1} parent=0 // pred_region
    _
  $region17: #{resblock_forward.1} parent=0 // pred_fallthru
    _
  // Predicated region
  $region18: #{resblock_forward.1} parent=0 // pred_check
    _
  $region19: #{resblock_forward.1} parent=0 // pred_check_branch
    %19 = sbr.rel (0) target = $region21
  $region20: #{resblock_forward.1} parent=0 // pred_region
    _
  $region21: #{resblock_forward.1} parent=0 // pred_fallthru
    _
  %v20 = vld [vmem:[%s0] sm:$0xff]
  %v21 = vld [vmem:[%s0 + $0x8] sm:$0xff]
  %v22 = vld [vmem:[%s0 + $0x10] sm:$0xff]
  %v23 = vld [vmem:[%s0 + $0x18] sm:$0xff]
  %v24 = vld [vmem:[%s1] sm:$0xff]
  %v25 = vld [vmem:[%s1 + $0x8] sm:$0xff]
  %v26 = vld [vmem:[%s1 + $0x10] sm:$0xff]
  %v27 = vld [vmem:[%s1 + $0x18] sm:$0xff]
  %v28 = vld [vmem:[%s1 + $0x20] sm:$0xff]
  %v29 = vld [vmem:[%s1 + $0x28] sm:$0xff]
  %v30 = vld [vmem:[%s1 + $0x30] sm:$0xff]
  %v31 = vld [vmem:[%s1 + $0x38] sm:$0xff]
  %v32 = vld [vmem:[%s1 + $0x40] sm:$0xff]
  %v33 = vld [vmem:[%s1 + $0x48] sm:$0xff]
  %v34 = vld [vmem:[%s1 + $0x50] sm:$0xff]
  %v35 = vld [vmem:[%s1 + $0x58] sm:$0xff]
  %v36 = vld [vmem:[%s1 + $0x60] sm:$0xff]
  %v37 = vld [vmem:[%s1 + $0x68] sm:$0xff]
  %v38 = vld [vmem:[%s1 + $0x70] sm:$0xff]
  %v39 = vld [vmem:[%s1 + $0x78] sm:$0xff]
  %v40 = vld [vmem:[%s1 + $0x80] sm:$0xff]
  %v41 = vld [vmem:[%s1 + $0x88] sm:$0xff]
  %v42 = vld [vmem:[%s1 + $0x90] sm:$0xff]
  %v43 = vld [vmem:[%s1 + $0x98] sm:$0xff]
  %v44 = vld [vmem:[%s1 + $0xa0] sm:$0xff]
  %v45 = vld [vmem:[%s1 + $0xa8] sm:$0xff]
  %v46 = vld [vmem:[%s1 + $0xb0] sm:$0xff]
  %v47 = vld [vmem:[%s1 + $0xb8] sm:$0xff]
  %vm48 = vcmask 523264
  %v50 = vsel %vm48, %v21, 0
  %v53 = vsel %vm48, %v23, 0
  %55 = vmatprep.subr.mxu0 0.0
  %56 = vmatpush1.msra.mxu0 %v24
  %57 = vmatprep.subr.mxu0 0.0
  %58 = vmatpush1.msra.mxu0 %v25
  %59 = vmatprep.subr.mxu0 0.0
  %60 = vmatpush1.msra.mxu0 %v26
  %61 = vmatprep.subr.mxu0 0.0
  %62 = vmatpush1.msra.mxu0 %v27
  %63 = vmatprep.subr.mxu0 0.0
  %64 = vmatpush1.msra.mxu0 %v28
  %65 = vmatprep.subr.mxu0 0.0
  %66 = vmatpush1.msra.mxu0 %v29
  %67 = vmatprep.subr.mxu0 0.0
  %68 = vmatpush1.msra.mxu0 %v30
  %69 = vmatprep.subr.mxu0 0.0
  %70 = vmatpush1.msra.mxu0 %v31
  %71 = vmatprep.subr.mxu0 0.0
  %72 = vmatpush1.msra.mxu0 %v32
  %73 = vmatprep.subr.mxu0 0.0
  %74 = vmatpush1.msra.mxu0 %v33
  %75 = vmatprep.subr.mxu0 0.0
  %76 = vmatpush1.msra.mxu0 %v34
  %77 = vmatprep.subr.mxu0 0.0
  %78 = vmatpush1.msra.mxu0 %v35
  %79 = vmatprep.subr.mxu0 0.0
  %80 = vmatpush1.msra.mxu0 %v36
  %81 = vmatprep.subr.mxu0 0.0
  %82 = vmatpush1.msra.mxu0 %v37
  %83 = vmatprep.subr.mxu0 0.0
  %84 = vmatpush1.msra.mxu0 %v38
  %85 = vmatprep.subr.mxu0 0.0
  %86 = vmatpush1.msra.mxu0 %v39
  %87 = vmatprep.subr.mxu0 0.0
  %88 = vmatpush1.msra.mxu0 %v40
  %89 = vmatprep.subr.mxu0 0.0
  %90 = vmatpush1.msra.mxu0 %v41
  %91 = vmatprep.subr.mxu0 0.0
  %92 = vmatpush1.msra.mxu0 %v42
  %93 = vmatprep.subr.mxu0 0.0
  %94 = vmatpush1.msra.mxu0 %v43
  %95 = vmatprep.subr.mxu0 0.0
  %96 = vmatpush1.msra.mxu0 %v44
  %97 = vmatprep.subr.mxu0 0.0
  %98 = vmatpush1.msra.mxu0 %v45
  %99 = vmatprep.subr.mxu0 0.0
  %100 = vmatpush1.msra.mxu0 %v46
  %101 = vmatprep.subr.mxu0 0.0
  %102 = vmatpush1.msra.mxu0 %v47
  %103 = vmatprep.subr.mxu0 0.0
  %104 = vmatpush1.msra.mxu0 0.0
  %105 = vmatprep.subr.mxu0 0.0
  %106 = vmatpush1.msra.mxu0 0.0
  %107 = vmatprep.subr.mxu0 0.0
  %108 = vmatpush1.msra.mxu0 0.0
  %109 = vmatprep.subr.mxu0 0.0
  %110 = vmatpush1.msra.mxu0 0.0
  %111 = vmatprep.subr.mxu0 0.0
  %112 = vmatpush1.msra.mxu0 0.0
  %113 = vmatprep.subr.mxu0 0.0
  %114 = vmatpush1.msra.mxu0 0.0
  %115 = vmatprep.subr.mxu0 0.0
  %116 = vmatpush1.msra.mxu0 0.0
  %117 = vmatprep.subr.mxu0 0.0
  %118 = vmatpush1.msra.mxu0 0.0
  %119 = vmatprep.mubr.f32.mxu0 %v50
  %120 = vmatmul.mubr.f32.gmra.mrb[0].mxu0 %v20
  %v121 = vpop.f32.mrb[0].mxu0
  %v122 = vadd.f32 0.0, %v121
  %v123 = vpop.f32.mrb[0].mxu0
  %124 = vmatprep.mubr.f32.mxu0 %v53
  %125 = vmatmul.mubr.f32.gmra.mrb[0].mxu0 %v22
  %v126 = vpop.f32.mrb[0].mxu0
  %v127 = vadd.f32 0.0, %v126
  %v128 = vpop.f32.mrb[0].mxu0
  %129 = vdwg.mxu0
  %v130 = vld [vmem:[%s2] sm:$0x1]
  %v132 = vlaneseq
  %v133 = vshrl.u32 %v132, 7
  %v134 = vsub.s32 0, %v133
  %v135 = vrot.slane %v130, %v134
  %v137 = vadd.f32 %v122, %v135
  %v138 = vadd.f32 %v127, %v135
  %v139 = vmax.f32 %v137, 0.0
  %v140 = vmax.f32 %v138, 0.0
  %141 = vst [vmem:[#allocation2] sm:$0xff] 0.0
  %142 = vst.msk [vmem:[#allocation2 + $0x8] sm:$0xff] %vm48, 0.0
  %143 = vst [vmem:[#allocation2 + $0x10] sm:$0xff] 0.0
  %144 = vst.msk [vmem:[#allocation2 + $0x18] sm:$0xff] %vm48, 0.0
  %147 = vrot.lane.b32.xlu0 %v139, 64
  %v148 = vpop.permute.xlu0 %147
  %149 = vrot.lane.b32.xlu0 %v140, 64
  %v150 = vpop.permute.xlu0 %149
  %vm153 = vcmask 1048064
  %154 = vst.msk [vmem:[#allocation2] sm:$0xff] %vm153, %v148
  %155 = vst.msk [vmem:[#allocation2 + $0x10] sm:$0xff] %vm153, %v150
  %v156 = vrot.slane %v139, 7
  %vm158 = vcmask 523265
  %159 = vst.msk [vmem:[#allocation2] sm:$0xfe] %vm158, %v156
  %v160 = vrot.slane %v139, 1
  %vm162 = vcmask 522240
  %163 = vst.msk [vmem:[#allocation2 + $0x8] sm:$0x7f] %vm162, %v160
  %v164 = vrot.slane %v140, 7
  %166 = vst.msk [vmem:[#allocation2 + $0x10] sm:$0xfe] %vm158, %v164
  %v167 = vrot.slane %v140, 1
  %169 = vst.msk [vmem:[#allocation2 + $0x18] sm:$0x7f] %vm162, %v167
  %v170 = vld [vmem:[#allocation2] sm:$0xff]
  %v171 = vld [vmem:[#allocation2 + $0x8] sm:$0xff]
  %v172 = vld [vmem:[#allocation2 + $0x10] sm:$0xff]
  %v173 = vld [vmem:[#allocation2 + $0x18] sm:$0xff]
  %v174 = vld [vmem:[%s3] sm:$0xff]
  %v175 = vld [vmem:[%s3 + $0x8] sm:$0xff]
  %v176 = vld [vmem:[%s3 + $0x10] sm:$0xff]
  %v177 = vld [vmem:[%s3 + $0x18] sm:$0xff]
  %v178 = vld [vmem:[%s3 + $0x20] sm:$0xff]
  %v179 = vld [vmem:[%s3 + $0x28] sm:$0xff]
  %v180 = vld [vmem:[%s3 + $0x30] sm:$0xff]
  %v181 = vld [vmem:[%s3 + $0x38] sm:$0xff]
  %v182 = vld [vmem:[%s3 + $0x40] sm:$0xff]
  %v183 = vld [vmem:[%s3 + $0x48] sm:$0xff]
  %v184 = vld [vmem:[%s3 + $0x50] sm:$0xff]
  %v185 = vld [vmem:[%s3 + $0x58] sm:$0xff]
  %v186 = vld [vmem:[%s3 + $0x60] sm:$0xff]
  %v187 = vld [vmem:[%s3 + $0x68] sm:$0xff]
  %v188 = vld [vmem:[%s3 + $0x70] sm:$0xff]
  %v189 = vld [vmem:[%s3 + $0x78] sm:$0xff]
  %v190 = vld [vmem:[%s3 + $0x80] sm:$0xff]
  %v191 = vld [vmem:[%s3 + $0x88] sm:$0xff]
  %v192 = vld [vmem:[%s3 + $0x90] sm:$0xff]
  %v193 = vld [vmem:[%s3 + $0x98] sm:$0xff]
  %v194 = vld [vmem:[%s3 + $0xa0] sm:$0xff]
  %v195 = vld [vmem:[%s3 + $0xa8] sm:$0xff]
  %v196 = vld [vmem:[%s3 + $0xb0] sm:$0xff]
  %v197 = vld [vmem:[%s3 + $0xb8] sm:$0xff]
  %200 = vrot.lane.b32.xlu0 %v122, 64
  %v201 = vpop.permute.xlu0 %200
  %202 = vrot.lane.b32.xlu0 %v127, 64
  %v203 = vpop.permute.xlu0 %202
  %v207 = vsel %vm48, %v171, 0
  %v210 = vsel %vm48, %v173, 0
  %212 = vmatprep.subr.mxu0 0.0
  %213 = vmatpush1.msra.mxu0 %v174
  %214 = vmatprep.subr.mxu0 0.0
  %215 = vmatpush1.msra.mxu0 %v175
  %216 = vmatprep.subr.mxu0 0.0
  %217 = vmatpush1.msra.mxu0 %v176
  %218 = vmatprep.subr.mxu0 0.0
  %219 = vmatpush1.msra.mxu0 %v177
  %220 = vmatprep.subr.mxu0 0.0
  %221 = vmatpush1.msra.mxu0 %v178
  %222 = vmatprep.subr.mxu0 0.0
  %223 = vmatpush1.msra.mxu0 %v179
  %224 = vmatprep.subr.mxu0 0.0
  %225 = vmatpush1.msra.mxu0 %v180
  %226 = vmatprep.subr.mxu0 0.0
  %227 = vmatpush1.msra.mxu0 %v181
  %228 = vmatprep.subr.mxu0 0.0
  %229 = vmatpush1.msra.mxu0 %v182
  %230 = vmatprep.subr.mxu0 0.0
  %231 = vmatpush1.msra.mxu0 %v183
  %232 = vmatprep.subr.mxu0 0.0
  %233 = vmatpush1.msra.mxu0 %v184
  %234 = vmatprep.subr.mxu0 0.0
  %235 = vmatpush1.msra.mxu0 %v185
  %236 = vmatprep.subr.mxu0 0.0
  %237 = vmatpush1.msra.mxu0 %v186
  %238 = vmatprep.subr.mxu0 0.0
  %239 = vmatpush1.msra.mxu0 %v187
  %240 = vmatprep.subr.mxu0 0.0
  %241 = vmatpush1.msra.mxu0 %v188
  %242 = vmatprep.subr.mxu0 0.0
  %243 = vmatpush1.msra.mxu0 %v189
  %244 = vmatprep.subr.mxu0 0.0
  %245 = vmatpush1.msra.mxu0 %v190
  %246 = vmatprep.subr.mxu0 0.0
  %247 = vmatpush1.msra.mxu0 %v191
  %248 = vmatprep.subr.mxu0 0.0
  %249 = vmatpush1.msra.mxu0 %v192
  %250 = vmatprep.subr.mxu0 0.0
  %251 = vmatpush1.msra.mxu0 %v193
  %252 = vmatprep.subr.mxu0 0.0
  %253 = vmatpush1.msra.mxu0 %v194
  %254 = vmatprep.subr.mxu0 0.0
  %255 = vmatpush1.msra.mxu0 %v195
  %256 = vmatprep.subr.mxu0 0.0
  %257 = vmatpush1.msra.mxu0 %v196
  %258 = vmatprep.subr.mxu0 0.0
  %259 = vmatpush1.msra.mxu0 %v197
  %260 = vmatprep.subr.mxu0 0.0
  %261 = vmatpush1.msra.mxu0 0.0
  %262 = vmatprep.subr.mxu0 0.0
  %263 = vmatpush1.msra.mxu0 0.0
  %264 = vmatprep.subr.mxu0 0.0
  %265 = vmatpush1.msra.mxu0 0.0
  %266 = vmatprep.subr.mxu0 0.0
  %267 = vmatpush1.msra.mxu0 0.0
  %268 = vmatprep.subr.mxu0 0.0
  %269 = vmatpush1.msra.mxu0 0.0
  %270 = vmatprep.subr.mxu0 0.0
  %271 = vmatpush1.msra.mxu0 0.0
  %272 = vmatprep.subr.mxu0 0.0
  %273 = vmatpush1.msra.mxu0 0.0
  %274 = vmatprep.subr.mxu0 0.0
  %275 = vmatpush1.msra.mxu0 0.0
  %276 = vmatprep.mubr.f32.mxu0 %v207
  %277 = vmatmul.mubr.f32.gmra.mrb[0].mxu0 %v170
  %v278 = vpop.f32.mrb[0].mxu0
  %v279 = vadd.f32 %v201, %v278
  %v280 = vpop.f32.mrb[0].mxu0
  %281 = vmatprep.mubr.f32.mxu0 %v210
  %282 = vmatmul.mubr.f32.gmra.mrb[0].mxu0 %v172
  %v283 = vpop.f32.mrb[0].mxu0
  %v284 = vadd.f32 %v203, %v283
  %v285 = vpop.f32.mrb[0].mxu0
  %286 = vdwg.mxu0
  %v287 = vld [vmem:[%s4] sm:$0x1]
  %v289 = vlaneseq
  %v290 = vshrl.u32 %v289, 7
  %v291 = vsub.s32 0, %v290
  %v292 = vrot.slane %v287, %v291
  %v294 = vadd.f32 %v279, %v292
  %v295 = vadd.f32 %v284, %v292
  %v296 = vmax.f32 %v294, 0.0
  %v297 = vmax.f32 %v295, 0.0
  %298 = vst.msk [vmem:[%s5] sm:$0xff] %vm48, %v296
  %299 = vst.msk [vmem:[%s5 + $0x8] sm:$0xff] %vm48, %v297
  // Predicated region
  $region22: #{resblock_forward.1} parent=0 // pred_check
    _
  $region23: #{resblock_forward.1} parent=0 // pred_check_branch
    %301 = sbr.rel (0) target = $region25
  $region24: #{resblock_forward.1} parent=0 // pred_region
    _
  $region25: #{resblock_forward.1} parent=0 // pred_fallthru
    _
  // Predicated region
  $region26: #{resblock_forward.1} parent=0 // pred_check
    _
  $region27: #{resblock_forward.1} parent=0 // pred_check_branch
    %303 = sbr.rel (0) target = $region29
  $region28: #{resblock_forward.1} parent=0 // pred_region
    _
  $region29: #{resblock_forward.1} parent=0 // pred_fallthru
    _

</llo_original>
